<compile_context>
chip_gen: v7x
topology: tpu7x:2x2x1
jax: 0.10.0
libtpu: 0.0.40
codegen_flags: <defaults>
</compile_context>

<pallas_src>
import functools

import jax
import jax.numpy as jnp
from jax import lax
from jax.experimental import pallas as pl
from jax.experimental.pallas import tpu as pltpu


def _doanet1_kernel(x_ref, w_ref, b_ref, g_ref, bt_ref, fw_ref, fb_ref,
                    out_ref, sum_sc, ssq_sc, max_sc, min_sc,
                    *, N, TN, L_out, C_out, K):
    # x_ref:   (TN, L, C_in)     f32   batch block, channels-last (lane-aligned)
    # w_ref:   (C_in, K*C_out)   f32   folded conv weight, col = k*C_out + o
    # b_ref:   (1, C_out)        f32   conv bias
    # g_ref:   (1, C_out)        f32   BN weight (gamma)
    # bt_ref:  (1, C_out)        f32   BN bias   (beta)
    # fw_ref:  (C_out, 2)        f32   Linear weight, pre-transposed
    # fb_ref:  (1, 2)            f32   Linear bias
    # out_ref: (N_pad, 2)        f32   resident across the grid, written at end
    # scratch: sum_sc/ssq_sc (1, C_out); max_sc/min_sc (N_pad, C_out)
    i = pl.program_id(0)

    @pl.when(i == 0)
    def _init():
        sum_sc[...] = jnp.zeros_like(sum_sc)
        ssq_sc[...] = jnp.zeros_like(ssq_sc)

    # ---- Conv1d: one lane-aligned matmul, K taps folded into output columns ----
    x = x_ref[...]                                   # (TN, L, C_in)
    w = w_ref[...]                                   # (C_in, K*C_out)
    z = jnp.einsum('slc,cf->slf', x, w,
                   preferred_element_type=jnp.float32)   # (TN, L, K*C_out)

    # combine taps: acc[s, t, o] = sum_k z[s, t+k, k*C_out + o]   (+ bias)
    acc = z[:, 0:L_out, 0:C_out]
    for k in range(1, K):                            # K small & static -> unrolled
        acc = acc + z[:, k:k + L_out, k * C_out:(k + 1) * C_out]
    acc = acc + b_ref[...]                           # broadcast (1, C_out)

    # ---- one-pass BN statistics + per-sample max/min of the conv output ----
    # mask out padded samples (only needed for the statistics)
    smask = (lax.broadcasted_iota(jnp.int32, (TN, 1), 0) + i * TN < N)
    smask = smask.astype(jnp.float32)                # (TN, 1)

    s1 = jnp.sum(acc, axis=1) * smask                # (TN, C_out)
    q1 = jnp.sum(acc * acc, axis=1) * smask          # (TN, C_out)
    sum_sc[...] += jnp.sum(s1, axis=0, keepdims=True)
    ssq_sc[...] += jnp.sum(q1, axis=0, keepdims=True)

    r0 = pl.multiple_of(i * TN, 8)                   # TN is a multiple of 8
    max_sc[pl.ds(r0, TN), :] = jnp.max(acc, axis=1)  # (TN, C_out)
    min_sc[pl.ds(r0, TN), :] = jnp.min(acc, axis=1)

    # ---- finalize: BN affine + LeakyReLU + time-max + Linear ----
    @pl.when(i == pl.num_programs(0) - 1)
    def _finalize():
        inv_cnt = 1.0 / float(N * L_out)
        mean = sum_sc[...] * inv_cnt                               # (1, C_out)
        var = jnp.maximum(ssq_sc[...] * inv_cnt - mean * mean, 0.0)
        scale = g_ref[...] * lax.rsqrt(var + 1e-5)                 # (1, C_out)
        shift = bt_ref[...] - mean * scale
        # max over time commutes with the monotone BN-affine + LeakyReLU once
        # the sign of the per-channel scale is known.
        sel = jnp.where(scale >= 0.0, max_sc[...], min_sc[...])    # (N_pad, C_out)
        y = sel * scale + shift
        y = jnp.where(y >= 0.0, y, 0.3 * y)                        # LeakyReLU(0.3)
        out = jnp.dot(y, fw_ref[...],
                      preferred_element_type=jnp.float32) + fb_ref[...]
        out_ref[...] = out.astype(out_ref.dtype)


def doanet1_forward(x, conv_w, conv_b, bn_gamma, bn_beta, fc_w, fc_b,
                    *, block_bytes=2 * 1024 * 1024):
    """x: (N, 160, L) float32 -> (N, 2) float32 (training-mode BN semantics)."""
    x = x.astype(jnp.float32)
    N, C_in, L = x.shape
    C_out, _, K = conv_w.shape
    L_out = L - K + 1
    assert L_out >= 1, "sequence too short for kernel_size"
    n_out = fc_w.shape[0]

    # ---- batch tile: multiple of 8 samples, sized to a modest VMEM block ----
    per_sample_bytes = L * C_in * 4
    tn = max(1, block_bytes // per_sample_bytes)
    tn = min(tn, N)
    TN = max(8, (tn // 8) * 8)
    N_pad = ((N + TN - 1) // TN) * TN
    grid = (N_pad // TN,)

    # ---- host-side layout plumbing (no transposes/reshapes inside the kernel) ----
    x_nlc = jnp.transpose(x, (0, 2, 1))                      # (N, L, C_in)
    if N_pad != N:
        x_nlc = jnp.pad(x_nlc, ((0, N_pad - N), (0, 0), (0, 0)))
    # wcols[c, k*C_out + o] = conv_w[o, c, k]
    wcols = jnp.transpose(conv_w.astype(jnp.float32), (1, 2, 0)).reshape(
        C_in, K * C_out)
    b2 = conv_b.reshape(1, C_out).astype(jnp.float32)
    g2 = bn_gamma.reshape(1, C_out).astype(jnp.float32)
    bt2 = bn_beta.reshape(1, C_out).astype(jnp.float32)
    fw = jnp.transpose(fc_w.astype(jnp.float32))             # (C_out, 2)
    fb = fc_b.reshape(1, n_out).astype(jnp.float32)

    kernel = functools.partial(_doanet1_kernel, N=N, TN=TN, L_out=L_out,
                               C_out=C_out, K=K)

    out = pl.pallas_call(
        kernel,
        out_shape=jax.ShapeDtypeStruct((N_pad, n_out), jnp.float32),
        grid_spec=pltpu.PrefetchScalarGridSpec(
            num_scalar_prefetch=0,
            grid=grid,
            in_specs=[
                pl.BlockSpec((TN, L, C_in), lambda i: (i, 0, 0)),     # x block
                pl.BlockSpec((C_in, K * C_out), lambda i: (0, 0)),    # wcols
                pl.BlockSpec((1, C_out), lambda i: (0, 0)),           # conv bias
                pl.BlockSpec((1, C_out), lambda i: (0, 0)),           # gamma
                pl.BlockSpec((1, C_out), lambda i: (0, 0)),           # beta
                pl.BlockSpec((C_out, n_out), lambda i: (0, 0)),       # fc weight
                pl.BlockSpec((1, n_out), lambda i: (0, 0)),           # fc bias
            ],
            out_specs=pl.BlockSpec((N_pad, n_out), lambda i: (0, 0)),
            scratch_shapes=[
                pltpu.VMEM((1, C_out), jnp.float32),      # running sum
                pltpu.VMEM((1, C_out), jnp.float32),      # running sum of squares
                pltpu.VMEM((N_pad, C_out), jnp.float32),  # per-sample conv max
                pltpu.VMEM((N_pad, C_out), jnp.float32),  # per-sample conv min
            ]),
        compiler_params=pltpu.CompilerParams(
            dimension_semantics=("arbitrary",),
            vmem_limit_bytes=32 * 1024 * 1024),
    )(x_nlc, wcols, b2, g2, bt2, fw, fb)
    return out[:N]


def _reference(x, conv_w, conv_b, g, b, fw, fb):
    """Pure-JAX reference (training-mode BN), for a sanity check."""
    N, C_in, L = x.shape
    C_out, _, K = conv_w.shape
    L_out = L - K + 1
    cols = jnp.stack([x[:, :, k:k + L_out] for k in range(K)], axis=-1)
    conv = jnp.einsum('nctk,ock->not', cols, conv_w,
                      precision=lax.Precision.HIGHEST) + conv_b[None, :, None]
    mean = conv.mean(axis=(0, 2), keepdims=True)
    var = ((conv - mean) ** 2).mean(axis=(0, 2), keepdims=True)
    y = (conv - mean) * lax.rsqrt(var + 1e-5) * g[None, :, None] + b[None, :, None]
    y = jnp.where(y >= 0, y, 0.3 * y)
    m = y.max(axis=-1)
    return jnp.dot(m, fw.T, precision=lax.Precision.HIGHEST) + fb


if __name__ == "__main__":
    key = jax.random.PRNGKey(0)
    k_x, k_w, k_b, k_fw, k_fb = jax.random.split(key, 5)

    # Small shapes consistent with the module: Conv1d needs C_in = 160.
    N, C_in, L = 2, 160, 16          # conv output length = 12
    C_out, K = 5, 5

    x = jax.random.normal(k_x, (N, C_in, L), dtype=jnp.float32)

    # Deterministic synthetic parameters (shapes match the nn.Module __init__).
    # gamma has mixed signs to exercise the max/min selection path.
    conv_w = 0.05 * jax.random.normal(k_w, (C_out, C_in, K), dtype=jnp.float32)
    conv_b = 0.1 * jax.random.normal(k_b, (C_out,), dtype=jnp.float32)
    bn_gamma = jnp.array([1.0, -0.5, 0.8, -1.2, 0.6], jnp.float32)
    bn_beta = jnp.array([0.1, -0.2, 0.3, 0.0, -0.1], jnp.float32)
    fc_w = 0.3 * jax.random.normal(k_fw, (2, C_out), dtype=jnp.float32)
    fc_b = 0.1 * jax.random.normal(k_fb, (2,), dtype=jnp.float32)

    out = doanet1_forward(x, conv_w, conv_b, bn_gamma, bn_beta, fc_w, fc_b)
    jax.block_until_ready(out)
    assert out.shape == (N, 2) and out.dtype == jnp.float32

    ref = _reference(x, conv_w, conv_b, bn_gamma, bn_beta, fc_w, fc_b)
    assert jnp.allclose(out, ref, atol=2e-2, rtol=2e-2), (out, ref)

    print("KERNEL_OK")
</pallas_src>

<mosaic_0001>
module attributes {stable_mosaic.version = 11 : i64} {
  func.func @_doanet1_kernel(%arg0: i32, %arg1: memref<8x16x160xf32, #tpu.memory_space<vmem>>, %arg2: memref<160x25xf32, #tpu.memory_space<vmem>>, %arg3: memref<1x5xf32, #tpu.memory_space<vmem>>, %arg4: memref<1x5xf32, #tpu.memory_space<vmem>>, %arg5: memref<1x5xf32, #tpu.memory_space<vmem>>, %arg6: memref<5x2xf32, #tpu.memory_space<vmem>>, %arg7: memref<1x2xf32, #tpu.memory_space<vmem>>, %arg8: memref<8x2xf32, #tpu.memory_space<vmem>>, %arg9: memref<1x5xf32, #tpu.memory_space<vmem>>, %arg10: memref<1x5xf32, #tpu.memory_space<vmem>>, %arg11: memref<8x5xf32, #tpu.memory_space<vmem>>, %arg12: memref<8x5xf32, #tpu.memory_space<vmem>>) attributes {dimension_semantics = [#tpu.dimension_semantics<arbitrary>], iteration_bounds = array<i64: 1>, scalar_prefetch = 0 : i64, scratch_operands = 4 : i64, tpu.core_type = #tpu.core_type<tc>, window_params = [{transform_indices = @transform_0, window_bounds = array<i64: 8, 16, 160>}, {pipeline_mode = #tpu.pipeline_mode<synchronous>, transform_indices = @transform_1, window_bounds = array<i64: 160, 25>}, {pipeline_mode = #tpu.pipeline_mode<synchronous>, transform_indices = @transform_2, window_bounds = array<i64: 1, 5>}, {pipeline_mode = #tpu.pipeline_mode<synchronous>, transform_indices = @transform_3, window_bounds = array<i64: 1, 5>}, {pipeline_mode = #tpu.pipeline_mode<synchronous>, transform_indices = @transform_4, window_bounds = array<i64: 1, 5>}, {pipeline_mode = #tpu.pipeline_mode<synchronous>, transform_indices = @transform_5, window_bounds = array<i64: 5, 2>}, {pipeline_mode = #tpu.pipeline_mode<synchronous>, transform_indices = @transform_6, window_bounds = array<i64: 1, 2>}, {pipeline_mode = #tpu.pipeline_mode<synchronous>, transform_indices = @transform_7, window_bounds = array<i64: 8, 2>}]} {
    %c0_i32 = arith.constant 0 : i32
    %0 = arith.cmpi eq, %arg0, %c0_i32 : i32
    %1 = arith.extui %0 : i1 to i32
    %c0_i32_0 = arith.constant 0 : i32
    %2 = arith.cmpi ne, %1, %c0_i32_0 : i32
    scf.if %2 {
      %cst_26 = arith.constant 0.000000e+00 : f32
      %55 = vector.broadcast %cst_26 : f32 to vector<1x5xf32>
      %c0_27 = arith.constant 0 : index
      %c0_28 = arith.constant 0 : index
      %56 = vector.load %arg9[%c0_27, %c0_28] : memref<1x5xf32, #tpu.memory_space<vmem>>, vector<1x5xf32>
      tpu.vector_store %arg9[%c0_27, %c0_28], %55 {strides = array<i32>} : memref<1x5xf32, #tpu.memory_space<vmem>>, vector<1x5xf32>,
      %cst_29 = arith.constant 0.000000e+00 : f32
      %57 = vector.broadcast %cst_29 : f32 to vector<1x5xf32>
      %c0_30 = arith.constant 0 : index
      %c0_31 = arith.constant 0 : index
      %58 = vector.load %arg10[%c0_30, %c0_31] : memref<1x5xf32, #tpu.memory_space<vmem>>, vector<1x5xf32>
      tpu.vector_store %arg10[%c0_30, %c0_31], %57 {strides = array<i32>} : memref<1x5xf32, #tpu.memory_space<vmem>>, vector<1x5xf32>,
    } else {
    }
    %c0 = arith.constant 0 : index
    %c0_1 = arith.constant 0 : index
    %c0_2 = arith.constant 0 : index
    %3 = vector.load %arg1[%c0, %c0_1, %c0_2] : memref<8x16x160xf32, #tpu.memory_space<vmem>>, vector<8x16x160xf32>
    %c0_3 = arith.constant 0 : index
    %c0_4 = arith.constant 0 : index
    %4 = vector.load %arg2[%c0_3, %c0_4] : memref<160x25xf32, #tpu.memory_space<vmem>>, vector<160x25xf32>
    "tpu.trace_start"() <{level = 10 : i32, message = "slc,cf->slf"}> : () -> ()
    %cst = arith.constant dense<0.000000e+00> : vector<8x16x25xf32>
    %5 = tpu.matmul %3, %4, %cst {dimension_numbers = #tpu.dot_dimension_numbers<[2], [0], [0, 1], [1], [0, 0, 0, 1, 1, 1], [], []>} : vector<8x16x160xf32>, vector<160x25xf32>, vector<8x16x25xf32> -> vector<8x16x25xf32>
    "tpu.trace_stop"() : () -> ()
    %6 = vector.extract_strided_slice %5 {offsets = [0, 0, 0], sizes = [8, 12, 5], strides = [1, 1, 1]} : vector<8x16x25xf32> to vector<8x12x5xf32>
    %7 = vector.extract_strided_slice %5 {offsets = [0, 1, 5], sizes = [8, 12, 5], strides = [1, 1, 1]} : vector<8x16x25xf32> to vector<8x12x5xf32>
    %8 = arith.addf %6, %7 : vector<8x12x5xf32>
    %9 = vector.extract_strided_slice %5 {offsets = [0, 2, 10], sizes = [8, 12, 5], strides = [1, 1, 1]} : vector<8x16x25xf32> to vector<8x12x5xf32>
    %10 = arith.addf %8, %9 : vector<8x12x5xf32>
    %11 = vector.extract_strided_slice %5 {offsets = [0, 3, 15], sizes = [8, 12, 5], strides = [1, 1, 1]} : vector<8x16x25xf32> to vector<8x12x5xf32>
    %12 = arith.addf %10, %11 : vector<8x12x5xf32>
    %13 = vector.extract_strided_slice %5 {offsets = [0, 4, 20], sizes = [8, 12, 5], strides = [1, 1, 1]} : vector<8x16x25xf32> to vector<8x12x5xf32>
    %14 = arith.addf %12, %13 : vector<8x12x5xf32>
    %c0_5 = arith.constant 0 : index
    %c0_6 = arith.constant 0 : index
    %15 = vector.load %arg3[%c0_5, %c0_6] : memref<1x5xf32, #tpu.memory_space<vmem>>, vector<1x5xf32>
    %16 = vector.shape_cast %15 : vector<1x5xf32> to vector<1x1x5xf32>
    %17 = vector.broadcast %16 : vector<1x1x5xf32> to vector<8x12x5xf32>
    %18 = arith.addf %14, %17 : vector<8x12x5xf32>
    %19 = tpu.iota {dimensions = array<i32: 0>} : vector<8x1xi32>
    %c8_i32 = arith.constant 8 : i32
    %20 = arith.muli %arg0, %c8_i32 : i32
    %21 = vector.broadcast %20 : i32 to vector<8x1xi32>
    %22 = arith.addi %19, %21 : vector<8x1xi32>
    %c2_i32 = arith.constant 2 : i32
    %23 = vector.broadcast %c2_i32 : i32 to vector<8x1xi32>
    %24 = arith.cmpi slt, %22, %23 : vector<8x1xi32>
    %25 = arith.extui %24 : vector<8x1xi1> to vector<8x1xi32>
    %26 = arith.sitofp %25 : vector<8x1xi32> to vector<8x1xf32>
    %cst_7 = arith.constant dense<0.000000e+00> : vector<8x5xf32>
    %27 = vector.multi_reduction <add>, %18, %cst_7 [1] : vector<8x12x5xf32> to vector<8x5xf32>
    %28 = vector.broadcast %26 : vector<8x1xf32> to vector<8x5xf32>
    %29 = arith.mulf %27, %28 : vector<8x5xf32>
    %30 = arith.mulf %18, %18 : vector<8x12x5xf32>
    %cst_8 = arith.constant dense<0.000000e+00> : vector<8x5xf32>
    %31 = vector.multi_reduction <add>, %30, %cst_8 [1] : vector<8x12x5xf32> to vector<8x5xf32>
    %32 = vector.broadcast %26 : vector<8x1xf32> to vector<8x5xf32>
    %33 = arith.mulf %31, %32 : vector<8x5xf32>
    %c0_9 = arith.constant 0 : index
    %c0_10 = arith.constant 0 : index
    %34 = vector.load %arg9[%c0_9, %c0_10] : memref<1x5xf32, #tpu.memory_space<vmem>>, vector<1x5xf32>
    %cst_11 = arith.constant dense<0.000000e+00> : vector<5xf32>
    %35 = vector.multi_reduction <add>, %29, %cst_11 [0] : vector<8x5xf32> to vector<5xf32>
    %36 = vector.shape_cast %35 : vector<5xf32> to vector<1x5xf32>
    %37 = arith.addf %34, %36 : vector<1x5xf32>
    %c0_12 = arith.constant 0 : index
    %c0_13 = arith.constant 0 : index
    %38 = vector.load %arg9[%c0_12, %c0_13] : memref<1x5xf32, #tpu.memory_space<vmem>>, vector<1x5xf32>
    tpu.vector_store %arg9[%c0_12, %c0_13], %37 {strides = array<i32>} : memref<1x5xf32, #tpu.memory_space<vmem>>, vector<1x5xf32>,
    %c0_14 = arith.constant 0 : index
    %c0_15 = arith.constant 0 : index
    %39 = vector.load %arg10[%c0_14, %c0_15] : memref<1x5xf32, #tpu.memory_space<vmem>>, vector<1x5xf32>
    %cst_16 = arith.constant dense<0.000000e+00> : vector<5xf32>
    %40 = vector.multi_reduction <add>, %33, %cst_16 [0] : vector<8x5xf32> to vector<5xf32>
    %41 = vector.shape_cast %40 : vector<5xf32> to vector<1x5xf32>
    %42 = arith.addf %39, %41 : vector<1x5xf32>
    %c0_17 = arith.constant 0 : index
    %c0_18 = arith.constant 0 : index
    %43 = vector.load %arg10[%c0_17, %c0_18] : memref<1x5xf32, #tpu.memory_space<vmem>>, vector<1x5xf32>
    tpu.vector_store %arg10[%c0_17, %c0_18], %42 {strides = array<i32>} : memref<1x5xf32, #tpu.memory_space<vmem>>, vector<1x5xf32>,
    %c8_i32_19 = arith.constant 8 : i32
    %44 = arith.muli %arg0, %c8_i32_19 : i32
    %45 = tpu.assume_multiple %44, 8 : i32
    %cst_20 = arith.constant dense<0xFF800000> : vector<8x5xf32>
    %46 = vector.multi_reduction <maximumf>, %18, %cst_20 [1] : vector<8x12x5xf32> to vector<8x5xf32>
    %47 = arith.index_cast %45 : i32 to index
    %c0_21 = arith.constant 0 : index
    %48 = vector.load %arg11[%47, %c0_21] : memref<8x5xf32, #tpu.memory_space<vmem>>, vector<8x5xf32>
    tpu.vector_store %arg11[%47, %c0_21], %46 {strides = array<i32>} : memref<8x5xf32, #tpu.memory_space<vmem>>, vector<8x5xf32>,
    %cst_22 = arith.constant dense<0x7F800000> : vector<8x5xf32>
    %49 = vector.multi_reduction <minimumf>, %18, %cst_22 [1] : vector<8x12x5xf32> to vector<8x5xf32>
    %50 = arith.index_cast %45 : i32 to index
    %c0_23 = arith.constant 0 : index
    %51 = vector.load %arg12[%50, %c0_23] : memref<8x5xf32, #tpu.memory_space<vmem>>, vector<8x5xf32>
    tpu.vector_store %arg12[%50, %c0_23], %49 {strides = array<i32>} : memref<8x5xf32, #tpu.memory_space<vmem>>, vector<8x5xf32>,
    %c0_i32_24 = arith.constant 0 : i32
    %52 = arith.cmpi eq, %arg0, %c0_i32_24 : i32
    %53 = arith.extui %52 : i1 to i32
    %c0_i32_25 = arith.constant 0 : i32
    %54 = arith.cmpi ne, %53, %c0_i32_25 : i32
    scf.if %54 {
      %c0_26 = arith.constant 0 : index
      %c0_27 = arith.constant 0 : index
      %55 = vector.load %arg9[%c0_26, %c0_27] : memref<1x5xf32, #tpu.memory_space<vmem>>, vector<1x5xf32>
      %cst_28 = arith.constant 0.0416666679 : f32
      %56 = vector.broadcast %cst_28 : f32 to vector<1x5xf32>
      %57 = arith.mulf %55, %56 : vector<1x5xf32>
      %c0_29 = arith.constant 0 : index
      %c0_30 = arith.constant 0 : index
      %58 = vector.load %arg10[%c0_29, %c0_30] : memref<1x5xf32, #tpu.memory_space<vmem>>, vector<1x5xf32>
      %cst_31 = arith.constant 0.0416666679 : f32
      %59 = vector.broadcast %cst_31 : f32 to vector<1x5xf32>
      %60 = arith.mulf %58, %59 : vector<1x5xf32>
      %61 = arith.mulf %57, %57 : vector<1x5xf32>
      %62 = arith.subf %60, %61 : vector<1x5xf32>
      %cst_32 = arith.constant 0.000000e+00 : f32
      %63 = vector.broadcast %cst_32 : f32 to vector<1x5xf32>
      %64 = arith.maximumf %62, %63 : vector<1x5xf32>
      %c0_33 = arith.constant 0 : index
      %c0_34 = arith.constant 0 : index
      %65 = vector.load %arg4[%c0_33, %c0_34] : memref<1x5xf32, #tpu.memory_space<vmem>>, vector<1x5xf32>
      %cst_35 = arith.constant 9.99999974E-6 : f32
      %66 = vector.broadcast %cst_35 : f32 to vector<1x5xf32>
      %67 = arith.addf %64, %66 : vector<1x5xf32>
      %68 = math.rsqrt %67 : vector<1x5xf32>
      %69 = arith.mulf %65, %68 : vector<1x5xf32>
      %c0_36 = arith.constant 0 : index
      %c0_37 = arith.constant 0 : index
      %70 = vector.load %arg5[%c0_36, %c0_37] : memref<1x5xf32, #tpu.memory_space<vmem>>, vector<1x5xf32>
      %71 = arith.mulf %57, %69 : vector<1x5xf32>
      %72 = arith.subf %70, %71 : vector<1x5xf32>
      %cst_38 = arith.constant 0.000000e+00 : f32
      %73 = vector.broadcast %cst_38 : f32 to vector<1x5xf32>
      %74 = arith.cmpf oge, %69, %73 : vector<1x5xf32>
      %c0_39 = arith.constant 0 : index
      %c0_40 = arith.constant 0 : index
      %75 = vector.load %arg11[%c0_39, %c0_40] : memref<8x5xf32, #tpu.memory_space<vmem>>, vector<8x5xf32>
      %c0_41 = arith.constant 0 : index
      %c0_42 = arith.constant 0 : index
      %76 = vector.load %arg12[%c0_41, %c0_42] : memref<8x5xf32, #tpu.memory_space<vmem>>, vector<8x5xf32>
      %77 = vector.shape_cast %74 : vector<1x5xi1> to vector<1x5xi1>
      %78 = vector.broadcast %77 : vector<1x5xi1> to vector<8x5xi1>
      %79 = arith.select %78, %75, %76 : vector<8x5xi1>, vector<8x5xf32>
      %80 = vector.broadcast %69 : vector<1x5xf32> to vector<8x5xf32>
      %81 = arith.mulf %79, %80 : vector<8x5xf32>
      %82 = vector.broadcast %72 : vector<1x5xf32> to vector<8x5xf32>
      %83 = arith.addf %81, %82 : vector<8x5xf32>
      %cst_43 = arith.constant 0.000000e+00 : f32
      %84 = vector.broadcast %cst_43 : f32 to vector<8x5xf32>
      %85 = arith.cmpf oge, %83, %84 : vector<8x5xf32>
      %cst_44 = arith.constant 3.000000e-01 : f32
      %86 = vector.broadcast %cst_44 : f32 to vector<8x5xf32>
      %87 = arith.mulf %86, %83 : vector<8x5xf32>
      %88 = arith.select %85, %83, %87 : vector<8x5xi1>, vector<8x5xf32>
      %c0_45 = arith.constant 0 : index
      %c0_46 = arith.constant 0 : index
      %89 = vector.load %arg6[%c0_45, %c0_46] : memref<5x2xf32, #tpu.memory_space<vmem>>, vector<5x2xf32>
      %cst_47 = arith.constant dense<0.000000e+00> : vector<8x2xf32>
      %90 = tpu.matmul %88, %89, %cst_47 {dimension_numbers = #tpu.dot_dimension_numbers<[1], [0], [0], [1], [0, 0, 1, 1], [], []>} : vector<8x5xf32>, vector<5x2xf32>, vector<8x2xf32> -> vector<8x2xf32>
      %c0_48 = arith.constant 0 : index
      %c0_49 = arith.constant 0 : index
      %91 = vector.load %arg7[%c0_48, %c0_49] : memref<1x2xf32, #tpu.memory_space<vmem>>, vector<1x2xf32>
      %92 = vector.broadcast %91 : vector<1x2xf32> to vector<8x2xf32>
      %93 = arith.addf %90, %92 : vector<8x2xf32>
      %c0_50 = arith.constant 0 : index
      %c0_51 = arith.constant 0 : index
      %94 = vector.load %arg8[%c0_50, %c0_51] : memref<8x2xf32, #tpu.memory_space<vmem>>, vector<8x2xf32>
      tpu.vector_store %arg8[%c0_50, %c0_51], %93 {strides = array<i32>} : memref<8x2xf32, #tpu.memory_space<vmem>>, vector<8x2xf32>,
    } else {
    }
    return
  }
  func.func @transform_0(%arg0: i32) -> (i32, i32, i32) {
    %c0_i32 = arith.constant 0 : i32
    %c0_i32_0 = arith.constant 0 : i32
    %c0_i32_1 = arith.constant 0 : i32
    return %arg0, %c0_i32, %c0_i32_0 : i32, i32, i32
  }
  func.func @transform_1(%arg0: i32) -> (i32, i32) {
    %c0_i32 = arith.constant 0 : i32
    %c0_i32_0 = arith.constant 0 : i32
    %c0_i32_1 = arith.constant 0 : i32
    return %c0_i32, %c0_i32_0 : i32, i32
  }
  func.func @transform_2(%arg0: i32) -> (i32, i32) {
    %c0_i32 = arith.constant 0 : i32
    %c0_i32_0 = arith.constant 0 : i32
    %c0_i32_1 = arith.constant 0 : i32
    return %c0_i32, %c0_i32_0 : i32, i32
  }
  func.func @transform_3(%arg0: i32) -> (i32, i32) {
    %c0_i32 = arith.constant 0 : i32
    %c0_i32_0 = arith.constant 0 : i32
    %c0_i32_1 = arith.constant 0 : i32
    return %c0_i32, %c0_i32_0 : i32, i32
  }
  func.func @transform_4(%arg0: i32) -> (i32, i32) {
    %c0_i32 = arith.constant 0 : i32
    %c0_i32_0 = arith.constant 0 : i32
    %c0_i32_1 = arith.constant 0 : i32
    return %c0_i32, %c0_i32_0 : i32, i32
  }
  func.func @transform_5(%arg0: i32) -> (i32, i32) {
    %c0_i32 = arith.constant 0 : i32
    %c0_i32_0 = arith.constant 0 : i32
    %c0_i32_1 = arith.constant 0 : i32
    return %c0_i32, %c0_i32_0 : i32, i32
  }
  func.func @transform_6(%arg0: i32) -> (i32, i32) {
    %c0_i32 = arith.constant 0 : i32
    %c0_i32_0 = arith.constant 0 : i32
    %c0_i32_1 = arith.constant 0 : i32
    return %c0_i32, %c0_i32_0 : i32, i32
  }
  func.func @transform_7(%arg0: i32) -> (i32, i32) {
    %c0_i32 = arith.constant 0 : i32
    %c0_i32_0 = arith.constant 0 : i32
    %c0_i32_1 = arith.constant 0 : i32
    return %c0_i32, %c0_i32_0 : i32, i32
  }
}

</mosaic_0001>

<llo_original>
// kernel: tpu_custom_call.1
$region0: #{tpu_custom_call.1}
  #allocation0 [shape = 'u32[]', space=smem, size = 0x4, offset = 0x4, fixed_abs, tag = 'smem constant byte address 0x4 - core index']
  #allocation1 [shape = 'u32[144,128]{1,0:T(1,128)}', space=vmem, size = 0x12000, scoped, tag = 'internal scratch']
  #allocation2 [shape = 'f32[1,5]{1,0:T(1,128)}', space=vmem, size = 0x200, scoped, tag = 'scratch operand']
  #allocation3 [shape = 'f32[1,5]{1,0:T(1,128)}', space=vmem, size = 0x200, scoped, tag = 'scratch operand']
  #allocation4 [shape = 'f32[8,5]{1,0:T(8,128)}', space=vmem, size = 0x1000, scoped, tag = 'scratch operand']
  #allocation5 [shape = 'f32[8,5]{1,0:T(8,128)}', space=vmem, size = 0x1000, scoped, tag = 'scratch operand']
  %s0 = inlined_call_operand.hbm [shape: f32[8,16,160], index: 0, kind: input, shape index: {}]
  %s1 = inlined_call_operand.vmem [shape: f32[160,25], index: 1, kind: input, shape index: {}]
  %s2 = inlined_call_operand.vmem [shape: f32[1,5], index: 2, kind: input, shape index: {}]
  %s3 = inlined_call_operand.vmem [shape: f32[1,5], index: 3, kind: input, shape index: {}]
  %s4 = inlined_call_operand.vmem [shape: f32[1,5], index: 4, kind: input, shape index: {}]
  %s5 = inlined_call_operand.vmem [shape: f32[5,2], index: 5, kind: input, shape index: {}]
  %s6 = inlined_call_operand.vmem [shape: f32[1,2], index: 6, kind: input, shape index: {}]
  %s7 = inlined_call_operand.vmem [shape: f32[8,2], index: 7, kind: output, shape index: {}]
  %s8 = sld [smem:[#allocation0]]
  $region50: #{tpu_custom_call.1} parent=0
    _
  %s10 = ssub.s32 1, %s8
  %s11 = scalar_select 0, %s10, %s8
  $region1: #{tpu_custom_call.1} parent=0
    #allocation6 [shape = 'u8[131072]{0}', space=vmem, size = 0x20000, scoped, tag = 'input window, operand 0, single buffered']
    #allocation7 [shape = 's32[1]{0}', space=sflag, size = 0x4, scoped, tag = 'scoped memory for tpu_custom_call.1']
    %12 = vsyncpa [#allocation7], 0
    // Predicated region
    $region2: #{tpu_custom_call.1} parent=1 // pred_check
      _
    $region3: #{tpu_custom_call.1} parent=1 // pred_check_branch
      %14 = sbr.rel (0) target = $region5
    $region4: #{tpu_custom_call.1} parent=1 // pred_region
      %s16 = ssub.s32 4096, 4096
      %17 = vsyncadd [#allocation7], %s16
      %s18 = sshll.u32 [#allocation6], 4
      %s19 = int_to_ptr.vmem [resolvable:$true] %s18
      %24 = dma.hbm_to_vmem [thread:$0]  %s0, 4096, %s19, [#allocation7], 256, 256, 16
    $region5: #{tpu_custom_call.1} parent=1 // pred_fallthru
      _
    // Predicated region
    $region6: #{tpu_custom_call.1} parent=1 // pred_check
      _
    $region7: #{tpu_custom_call.1} parent=1 // pred_check_branch
      %26 = sbr.rel (0) target = $region9
    $region8: #{tpu_custom_call.1} parent=1 // pred_region
      _
    $region9: #{tpu_custom_call.1} parent=1 // pred_fallthru
      _
    // Predicated region
    $region10: #{tpu_custom_call.1} parent=1 // pred_check
      _
    $region11: #{tpu_custom_call.1} parent=1 // pred_check_branch
      %28 = sbr.rel (0) target = $region13
    $region12: #{tpu_custom_call.1} parent=1 // pred_region
      _
    $region13: #{tpu_custom_call.1} parent=1 // pred_fallthru
      _
    // Predicated region
    $region14: #{tpu_custom_call.1} parent=1 // pred_check
      _
    $region15: #{tpu_custom_call.1} parent=1 // pred_check_branch
      %30 = sbr.rel (0) target = $region17
    $region16: #{tpu_custom_call.1} parent=1 // pred_region
      _
    $region17: #{tpu_custom_call.1} parent=1 // pred_fallthru
      _
    // Predicated region
    $region18: #{tpu_custom_call.1} parent=1 // pred_check
      _
    $region19: #{tpu_custom_call.1} parent=1 // pred_check_branch
      %32 = sbr.rel (0) target = $region21
    $region20: #{tpu_custom_call.1} parent=1 // pred_region
      _
    $region21: #{tpu_custom_call.1} parent=1 // pred_fallthru
      _
    // Predicated region
    $region22: #{tpu_custom_call.1} parent=1 // pred_check
      _
    $region23: #{tpu_custom_call.1} parent=1 // pred_check_branch
      %34 = sbr.rel (0) target = $region25
    $region24: #{tpu_custom_call.1} parent=1 // pred_region
      _
    $region25: #{tpu_custom_call.1} parent=1 // pred_fallthru
      _
    // Predicated region
    $region26: #{tpu_custom_call.1} parent=1 // pred_check
      _
    $region27: #{tpu_custom_call.1} parent=1 // pred_check_branch
      %36 = sbr.rel (0) target = $region29
    $region28: #{tpu_custom_call.1} parent=1 // pred_region
      _
    $region29: #{tpu_custom_call.1} parent=1 // pred_fallthru
      _
    // Predicated region
    $region30: #{tpu_custom_call.1} parent=1 // pred_check
      _
    $region31: #{tpu_custom_call.1} parent=1 // pred_check_branch
      %38 = sbr.rel (0) target = $region33
    $region32: #{tpu_custom_call.1} parent=1 // pred_region
      %39 = dma.done [#allocation7], 4096
    $region33: #{tpu_custom_call.1} parent=1 // pred_fallthru
      _
    %p40 = scmp.eq.s32.totalorder 0, 0
    // Predicated region
    $region34: #{tpu_custom_call.1} parent=1 // pred_check
      %p41 = pneg %p40
    $region35: #{tpu_custom_call.1} parent=1 // pred_check_branch
      %43 = sbr.rel (%p41) target = $region37
    $region36: #{tpu_custom_call.1} parent=1 // pred_region
      %vm44 = vcmask 32768
      %45 = vst.msk [vmem:[#allocation2] sm:$0x1] %vm44, 0.0
      %46 = vst.msk [vmem:[#allocation3] sm:$0x1] %vm44, 0.0
    $region37: #{tpu_custom_call.1} parent=1 // pred_fallthru
      _
    %v47 = vld [vmem:[#allocation6] sm:$0xff]
    %v48 = vld [vmem:[#allocation6 + $0x8] sm:$0xff]
    %v49 = vld [vmem:[#allocation6 + $0x10] sm:$0xff]
    %v50 = vld [vmem:[#allocation6 + $0x18] sm:$0xff]
    %v51 = vld [vmem:[#allocation6 + $0x20] sm:$0xff]
    %v52 = vld [vmem:[#allocation6 + $0x28] sm:$0xff]
    %v53 = vld [vmem:[#allocation6 + $0x30] sm:$0xff]
    %v54 = vld [vmem:[#allocation6 + $0x38] sm:$0xff]
    %v55 = vld [vmem:[#allocation6 + $0x40] sm:$0xff]
    %v56 = vld [vmem:[#allocation6 + $0x48] sm:$0xff]
    %v57 = vld [vmem:[#allocation6 + $0x50] sm:$0xff]
    %v58 = vld [vmem:[#allocation6 + $0x58] sm:$0xff]
    %v59 = vld [vmem:[#allocation6 + $0x60] sm:$0xff]
    %v60 = vld [vmem:[#allocation6 + $0x68] sm:$0xff]
    %v61 = vld [vmem:[#allocation6 + $0x70] sm:$0xff]
    %v62 = vld [vmem:[#allocation6 + $0x78] sm:$0xff]
    %v63 = vld [vmem:[#allocation6 + $0x80] sm:$0xff]
    %v64 = vld [vmem:[#allocation6 + $0x88] sm:$0xff]
    %v65 = vld [vmem:[#allocation6 + $0x90] sm:$0xff]
    %v66 = vld [vmem:[#allocation6 + $0x98] sm:$0xff]
    %v67 = vld [vmem:[#allocation6 + $0xa0] sm:$0xff]
    %v68 = vld [vmem:[#allocation6 + $0xa8] sm:$0xff]
    %v69 = vld [vmem:[#allocation6 + $0xb0] sm:$0xff]
    %v70 = vld [vmem:[#allocation6 + $0xb8] sm:$0xff]
    %v71 = vld [vmem:[#allocation6 + $0xc0] sm:$0xff]
    %v72 = vld [vmem:[#allocation6 + $0xc8] sm:$0xff]
    %v73 = vld [vmem:[#allocation6 + $0xd0] sm:$0xff]
    %v74 = vld [vmem:[#allocation6 + $0xd8] sm:$0xff]
    %v75 = vld [vmem:[#allocation6 + $0xe0] sm:$0xff]
    %v76 = vld [vmem:[#allocation6 + $0xe8] sm:$0xff]
    %v77 = vld [vmem:[#allocation6 + $0xf0] sm:$0xff]
    %v78 = vld [vmem:[#allocation6 + $0xf8] sm:$0xff]
    %v79 = vld [vmem:[%s1] sm:$0xff]
    %v80 = vld [vmem:[%s1 + $0x8] sm:$0xff]
    %v81 = vld [vmem:[%s1 + $0x10] sm:$0xff]
    %v82 = vld [vmem:[%s1 + $0x18] sm:$0xff]
    %v83 = vld [vmem:[%s1 + $0x20] sm:$0xff]
    %v84 = vld [vmem:[%s1 + $0x28] sm:$0xff]
    %v85 = vld [vmem:[%s1 + $0x30] sm:$0xff]
    %v86 = vld [vmem:[%s1 + $0x38] sm:$0xff]
    %v87 = vld [vmem:[%s1 + $0x40] sm:$0xff]
    %v88 = vld [vmem:[%s1 + $0x48] sm:$0xff]
    %v89 = vld [vmem:[%s1 + $0x50] sm:$0xff]
    %v90 = vld [vmem:[%s1 + $0x58] sm:$0xff]
    %v91 = vld [vmem:[%s1 + $0x60] sm:$0xff]
    %v92 = vld [vmem:[%s1 + $0x68] sm:$0xff]
    %v93 = vld [vmem:[%s1 + $0x70] sm:$0xff]
    %v94 = vld [vmem:[%s1 + $0x78] sm:$0xff]
    %v95 = vld [vmem:[%s1 + $0x80] sm:$0xff]
    %v96 = vld [vmem:[%s1 + $0x88] sm:$0xff]
    %v97 = vld [vmem:[%s1 + $0x90] sm:$0xff]
    %v98 = vld [vmem:[%s1 + $0x98] sm:$0xff]
    %vm99 = vcmask 261120
    %v101 = vsel %vm99, %v48, 0
    %v104 = vsel %vm99, %v50, 0
    %v107 = vsel %vm99, %v52, 0
    %v110 = vsel %vm99, %v54, 0
    %v113 = vsel %vm99, %v56, 0
    %v116 = vsel %vm99, %v58, 0
    %v119 = vsel %vm99, %v60, 0
    %v122 = vsel %vm99, %v62, 0
    %v125 = vsel %vm99, %v64, 0
    %v128 = vsel %vm99, %v66, 0
    %v131 = vsel %vm99, %v68, 0
    %v134 = vsel %vm99, %v70, 0
    %v137 = vsel %vm99, %v72, 0
    %v140 = vsel %vm99, %v74, 0
    %v143 = vsel %vm99, %v76, 0
    %v146 = vsel %vm99, %v78, 0
    %148 = vmatprep.subr.mxu0 0.0
    %149 = vmatpush1.msra.mxu0 %v79
    %150 = vmatprep.subr.mxu0 0.0
    %151 = vmatpush1.msra.mxu0 %v80
    %152 = vmatprep.subr.mxu0 0.0
    %153 = vmatpush1.msra.mxu0 %v81
    %154 = vmatprep.subr.mxu0 0.0
    %155 = vmatpush1.msra.mxu0 %v82
    %156 = vmatprep.subr.mxu0 0.0
    %157 = vmatpush1.msra.mxu0 %v83
    %158 = vmatprep.subr.mxu0 0.0
    %159 = vmatpush1.msra.mxu0 %v84
    %160 = vmatprep.subr.mxu0 0.0
    %161 = vmatpush1.msra.mxu0 %v85
    %162 = vmatprep.subr.mxu0 0.0
    %163 = vmatpush1.msra.mxu0 %v86
    %164 = vmatprep.subr.mxu0 0.0
    %165 = vmatpush1.msra.mxu0 %v87
    %166 = vmatprep.subr.mxu0 0.0
    %167 = vmatpush1.msra.mxu0 %v88
    %168 = vmatprep.subr.mxu0 0.0
    %169 = vmatpush1.msra.mxu0 %v89
    %170 = vmatprep.subr.mxu0 0.0
    %171 = vmatpush1.msra.mxu0 %v90
    %172 = vmatprep.subr.mxu0 0.0
    %173 = vmatpush1.msra.mxu0 %v91
    %174 = vmatprep.subr.mxu0 0.0
    %175 = vmatpush1.msra.mxu0 %v92
    %176 = vmatprep.subr.mxu0 0.0
    %177 = vmatpush1.msra.mxu0 %v93
    %178 = vmatprep.subr.mxu0 0.0
    %179 = vmatpush1.msra.mxu0 %v94
    %180 = vmatprep.subr.mxu0 0.0
    %181 = vmatpush1.msra.mxu0 %v95
    %182 = vmatprep.subr.mxu0 0.0
    %183 = vmatpush1.msra.mxu0 %v96
    %184 = vmatprep.subr.mxu0 0.0
    %185 = vmatpush1.msra.mxu0 %v97
    %186 = vmatprep.subr.mxu0 0.0
    %187 = vmatpush1.msra.mxu0 %v98
    %188 = vmatprep.subr.mxu0 0.0
    %189 = vmatpush1.msra.mxu0 0.0
    %190 = vmatprep.subr.mxu0 0.0
    %191 = vmatpush1.msra.mxu0 0.0
    %192 = vmatprep.subr.mxu0 0.0
    %193 = vmatpush1.msra.mxu0 0.0
    %194 = vmatprep.subr.mxu0 0.0
    %195 = vmatpush1.msra.mxu0 0.0
    %196 = vmatprep.subr.mxu0 0.0
    %197 = vmatpush1.msra.mxu0 0.0
    %198 = vmatprep.subr.mxu0 0.0
    %199 = vmatpush1.msra.mxu0 0.0
    %200 = vmatprep.subr.mxu0 0.0
    %201 = vmatpush1.msra.mxu0 0.0
    %202 = vmatprep.subr.mxu0 0.0
    %203 = vmatpush1.msra.mxu0 0.0
    %204 = vmatprep.subr.mxu0 0.0
    %205 = vmatpush1.msra.mxu0 0.0
    %206 = vmatprep.subr.mxu0 0.0
    %207 = vmatpush1.msra.mxu0 0.0
    %208 = vmatprep.subr.mxu0 0.0
    %209 = vmatpush1.msra.mxu0 0.0
    %210 = vmatprep.subr.mxu0 0.0
    %211 = vmatpush1.msra.mxu0 0.0
    %212 = vmatprep.mubr.f32.mxu0 %v101
    %213 = vmatmul.mubr.f32.gmra.mrb[0].mxu0 %v47
    %v214 = vpop.f32.mrb[0].mxu0
    %v215 = vadd.f32 0.0, %v214
    %v216 = vpop.f32.mrb[0].mxu0
    %217 = vmatprep.mubr.f32.mxu0 %v104
    %218 = vmatmul.mubr.f32.gmra.mrb[0].mxu0 %v49
    %v219 = vpop.f32.mrb[0].mxu0
    %v220 = vadd.f32 0.0, %v219
    %v221 = vpop.f32.mrb[0].mxu0
    %222 = vmatprep.mubr.f32.mxu0 %v107
    %223 = vmatmul.mubr.f32.gmra.mrb[0].mxu0 %v51
    %v224 = vpop.f32.mrb[0].mxu0
    %v225 = vadd.f32 0.0, %v224
    %v226 = vpop.f32.mrb[0].mxu0
    %227 = vmatprep.mubr.f32.mxu0 %v110
    %228 = vmatmul.mubr.f32.gmra.mrb[0].mxu0 %v53
    %v229 = vpop.f32.mrb[0].mxu0
    %v230 = vadd.f32 0.0, %v229
    %v231 = vpop.f32.mrb[0].mxu0
    %232 = vmatprep.mubr.f32.mxu0 %v113
    %233 = vmatmul.mubr.f32.gmra.mrb[0].mxu0 %v55
    %v234 = vpop.f32.mrb[0].mxu0
    %v235 = vadd.f32 0.0, %v234
    %v236 = vpop.f32.mrb[0].mxu0
    %237 = vmatprep.mubr.f32.mxu0 %v116
    %238 = vmatmul.mubr.f32.gmra.mrb[0].mxu0 %v57
    %v239 = vpop.f32.mrb[0].mxu0
    %v240 = vadd.f32 0.0, %v239
    %v241 = vpop.f32.mrb[0].mxu0
    %242 = vmatprep.mubr.f32.mxu0 %v119
    %243 = vmatmul.mubr.f32.gmra.mrb[0].mxu0 %v59
    %v244 = vpop.f32.mrb[0].mxu0
    %v245 = vadd.f32 0.0, %v244
    %v246 = vpop.f32.mrb[0].mxu0
    %247 = vmatprep.mubr.f32.mxu0 %v122
    %248 = vmatmul.mubr.f32.gmra.mrb[0].mxu0 %v61
    %v249 = vpop.f32.mrb[0].mxu0
    %v250 = vadd.f32 0.0, %v249
    %v251 = vpop.f32.mrb[0].mxu0
    %252 = vmatprep.mubr.f32.mxu0 %v125
    %253 = vmatmul.mubr.f32.gmra.mrb[0].mxu0 %v63
    %v254 = vpop.f32.mrb[0].mxu0
    %v255 = vadd.f32 0.0, %v254
    %v256 = vpop.f32.mrb[0].mxu0
    %257 = vmatprep.mubr.f32.mxu0 %v128
    %258 = vmatmul.mubr.f32.gmra.mrb[0].mxu0 %v65
    %v259 = vpop.f32.mrb[0].mxu0
    %v260 = vadd.f32 0.0, %v259
    %v261 = vpop.f32.mrb[0].mxu0
    %262 = vmatprep.mubr.f32.mxu0 %v131
    %263 = vmatmul.mubr.f32.gmra.mrb[0].mxu0 %v67
    %v264 = vpop.f32.mrb[0].mxu0
    %v265 = vadd.f32 0.0, %v264
    %v266 = vpop.f32.mrb[0].mxu0
    %267 = vmatprep.mubr.f32.mxu0 %v134
    %268 = vmatmul.mubr.f32.gmra.mrb[0].mxu0 %v69
    %v269 = vpop.f32.mrb[0].mxu0
    %v270 = vadd.f32 0.0, %v269
    %v271 = vpop.f32.mrb[0].mxu0
    %272 = vmatprep.mubr.f32.mxu0 %v137
    %273 = vmatmul.mubr.f32.gmra.mrb[0].mxu0 %v71
    %v274 = vpop.f32.mrb[0].mxu0
    %v275 = vadd.f32 0.0, %v274
    %v276 = vpop.f32.mrb[0].mxu0
    %277 = vmatprep.mubr.f32.mxu0 %v140
    %278 = vmatmul.mubr.f32.gmra.mrb[0].mxu0 %v73
    %v279 = vpop.f32.mrb[0].mxu0
    %v280 = vadd.f32 0.0, %v279
    %v281 = vpop.f32.mrb[0].mxu0
    %282 = vmatprep.mubr.f32.mxu0 %v143
    %283 = vmatmul.mubr.f32.gmra.mrb[0].mxu0 %v75
    %v284 = vpop.f32.mrb[0].mxu0
    %v285 = vadd.f32 0.0, %v284
    %v286 = vpop.f32.mrb[0].mxu0
    %287 = vmatprep.mubr.f32.mxu0 %v146
    %288 = vmatmul.mubr.f32.gmra.mrb[0].mxu0 %v77
    %v289 = vpop.f32.mrb[0].mxu0
    %v290 = vadd.f32 0.0, %v289
    %v291 = vpop.f32.mrb[0].mxu0
    %292 = vdwg.mxu0
    %vm309 = vcmask 1046528
    %v310 = vrot.slane %v215, 1
    %v311 = vrot.slane %v220, 1
    %v312 = vsel %vm309, %v310, %v311
    %v313 = vrot.slane %v225, 1
    %v314 = vrot.slane %v230, 1
    %v315 = vsel %vm309, %v313, %v314
    %v316 = vrot.slane %v235, 1
    %v317 = vrot.slane %v240, 1
    %v318 = vsel %vm309, %v316, %v317
    %v319 = vrot.slane %v245, 1
    %v320 = vrot.slane %v250, 1
    %v321 = vsel %vm309, %v319, %v320
    %v322 = vrot.slane %v255, 1
    %v323 = vrot.slane %v260, 1
    %v324 = vsel %vm309, %v322, %v323
    %v325 = vrot.slane %v265, 1
    %v326 = vrot.slane %v270, 1
    %v327 = vsel %vm309, %v325, %v326
    %v328 = vrot.slane %v275, 1
    %v329 = vrot.slane %v280, 1
    %v330 = vsel %vm309, %v328, %v329
    %v331 = vrot.slane %v285, 1
    %v332 = vrot.slane %v290, 1
    %v333 = vsel %vm309, %v331, %v332
    %334 = vrot.lane.b32.xlu0 %v312, 123
    %v335 = vpop.permute.xlu0 %334
    %336 = vrot.lane.b32.xlu0 %v311, 123
    %v337 = vpop.permute.xlu0 %336
    %338 = vrot.lane.b32.xlu0 %v315, 123
    %v339 = vpop.permute.xlu0 %338
    %340 = vrot.lane.b32.xlu0 %v314, 123
    %v341 = vpop.permute.xlu0 %340
    %342 = vrot.lane.b32.xlu0 %v318, 123
    %v343 = vpop.permute.xlu0 %342
    %344 = vrot.lane.b32.xlu0 %v317, 123
    %v345 = vpop.permute.xlu0 %344
    %346 = vrot.lane.b32.xlu0 %v321, 123
    %v347 = vpop.permute.xlu0 %346
    %348 = vrot.lane.b32.xlu0 %v320, 123
    %v349 = vpop.permute.xlu0 %348
    %350 = vrot.lane.b32.xlu0 %v324, 123
    %v351 = vpop.permute.xlu0 %350
    %352 = vrot.lane.b32.xlu0 %v323, 123
    %v353 = vpop.permute.xlu0 %352
    %354 = vrot.lane.b32.xlu0 %v327, 123
    %v355 = vpop.permute.xlu0 %354
    %356 = vrot.lane.b32.xlu0 %v326, 123
    %v357 = vpop.permute.xlu0 %356
    %358 = vrot.lane.b32.xlu0 %v330, 123
    %v359 = vpop.permute.xlu0 %358
    %360 = vrot.lane.b32.xlu0 %v329, 123
    %v361 = vpop.permute.xlu0 %360
    %362 = vrot.lane.b32.xlu0 %v333, 123
    %v363 = vpop.permute.xlu0 %362
    %364 = vrot.lane.b32.xlu0 %v332, 123
    %v365 = vpop.permute.xlu0 %364
    %v382 = vadd.f32 %v215, %v335
    %v383 = vadd.f32 %v220, %v337
    %v384 = vadd.f32 %v225, %v339
    %v385 = vadd.f32 %v230, %v341
    %v386 = vadd.f32 %v235, %v343
    %v387 = vadd.f32 %v240, %v345
    %v388 = vadd.f32 %v245, %v347
    %v389 = vadd.f32 %v250, %v349
    %v390 = vadd.f32 %v255, %v351
    %v391 = vadd.f32 %v260, %v353
    %v392 = vadd.f32 %v265, %v355
    %v393 = vadd.f32 %v270, %v357
    %v394 = vadd.f32 %v275, %v359
    %v395 = vadd.f32 %v280, %v361
    %v396 = vadd.f32 %v285, %v363
    %v397 = vadd.f32 %v290, %v365
    %vm398 = vcmask 1045504
    %v399 = vrot.slane %v215, 2
    %v400 = vrot.slane %v220, 2
    %v401 = vsel %vm398, %v399, %v400
    %v402 = vrot.slane %v225, 2
    %v403 = vrot.slane %v230, 2
    %v404 = vsel %vm398, %v402, %v403
    %v405 = vrot.slane %v235, 2
    %v406 = vrot.slane %v240, 2
    %v407 = vsel %vm398, %v405, %v406
    %v408 = vrot.slane %v245, 2
    %v409 = vrot.slane %v250, 2
    %v410 = vsel %vm398, %v408, %v409
    %v411 = vrot.slane %v255, 2
    %v412 = vrot.slane %v260, 2
    %v413 = vsel %vm398, %v411, %v412
    %v414 = vrot.slane %v265, 2
    %v415 = vrot.slane %v270, 2
    %v416 = vsel %vm398, %v414, %v415
    %v417 = vrot.slane %v275, 2
    %v418 = vrot.slane %v280, 2
    %v419 = vsel %vm398, %v417, %v418
    %v420 = vrot.slane %v285, 2
    %v421 = vrot.slane %v290, 2
    %v422 = vsel %vm398, %v420, %v421
    %423 = vrot.lane.b32.xlu0 %v401, 118
    %v424 = vpop.permute.xlu0 %423
    %425 = vrot.lane.b32.xlu0 %v400, 118
    %v426 = vpop.permute.xlu0 %425
    %427 = vrot.lane.b32.xlu0 %v404, 118
    %v428 = vpop.permute.xlu0 %427
    %429 = vrot.lane.b32.xlu0 %v403, 118
    %v430 = vpop.permute.xlu0 %429
    %431 = vrot.lane.b32.xlu0 %v407, 118
    %v432 = vpop.permute.xlu0 %431
    %433 = vrot.lane.b32.xlu0 %v406, 118
    %v434 = vpop.permute.xlu0 %433
    %435 = vrot.lane.b32.xlu0 %v410, 118
    %v436 = vpop.permute.xlu0 %435
    %437 = vrot.lane.b32.xlu0 %v409, 118
    %v438 = vpop.permute.xlu0 %437
    %439 = vrot.lane.b32.xlu0 %v413, 118
    %v440 = vpop.permute.xlu0 %439
    %441 = vrot.lane.b32.xlu0 %v412, 118
    %v442 = vpop.permute.xlu0 %441
    %443 = vrot.lane.b32.xlu0 %v416, 118
    %v444 = vpop.permute.xlu0 %443
    %445 = vrot.lane.b32.xlu0 %v415, 118
    %v446 = vpop.permute.xlu0 %445
    %447 = vrot.lane.b32.xlu0 %v419, 118
    %v448 = vpop.permute.xlu0 %447
    %449 = vrot.lane.b32.xlu0 %v418, 118
    %v450 = vpop.permute.xlu0 %449
    %451 = vrot.lane.b32.xlu0 %v422, 118
    %v452 = vpop.permute.xlu0 %451
    %453 = vrot.lane.b32.xlu0 %v421, 118
    %v454 = vpop.permute.xlu0 %453
    %v471 = vadd.f32 %v382, %v424
    %v472 = vadd.f32 %v383, %v426
    %v473 = vadd.f32 %v384, %v428
    %v474 = vadd.f32 %v385, %v430
    %v475 = vadd.f32 %v386, %v432
    %v476 = vadd.f32 %v387, %v434
    %v477 = vadd.f32 %v388, %v436
    %v478 = vadd.f32 %v389, %v438
    %v479 = vadd.f32 %v390, %v440
    %v480 = vadd.f32 %v391, %v442
    %v481 = vadd.f32 %v392, %v444
    %v482 = vadd.f32 %v393, %v446
    %v483 = vadd.f32 %v394, %v448
    %v484 = vadd.f32 %v395, %v450
    %v485 = vadd.f32 %v396, %v452
    %v486 = vadd.f32 %v397, %v454
    %vm487 = vcmask 1044480
    %v488 = vrot.slane %v215, 3
    %v489 = vrot.slane %v220, 3
    %v490 = vsel %vm487, %v488, %v489
    %v491 = vrot.slane %v225, 3
    %v492 = vrot.slane %v230, 3
    %v493 = vsel %vm487, %v491, %v492
    %v494 = vrot.slane %v235, 3
    %v495 = vrot.slane %v240, 3
    %v496 = vsel %vm487, %v494, %v495
    %v497 = vrot.slane %v245, 3
    %v498 = vrot.slane %v250, 3
    %v499 = vsel %vm487, %v497, %v498
    %v500 = vrot.slane %v255, 3
    %v501 = vrot.slane %v260, 3
    %v502 = vsel %vm487, %v500, %v501
    %v503 = vrot.slane %v265, 3
    %v504 = vrot.slane %v270, 3
    %v505 = vsel %vm487, %v503, %v504
    %v506 = vrot.slane %v275, 3
    %v507 = vrot.slane %v280, 3
    %v508 = vsel %vm487, %v506, %v507
    %v509 = vrot.slane %v285, 3
    %v510 = vrot.slane %v290, 3
    %v511 = vsel %vm487, %v509, %v510
    %512 = vrot.lane.b32.xlu0 %v490, 113
    %v513 = vpop.permute.xlu0 %512
    %514 = vrot.lane.b32.xlu0 %v489, 113
    %v515 = vpop.permute.xlu0 %514
    %516 = vrot.lane.b32.xlu0 %v493, 113
    %v517 = vpop.permute.xlu0 %516
    %518 = vrot.lane.b32.xlu0 %v492, 113
    %v519 = vpop.permute.xlu0 %518
    %520 = vrot.lane.b32.xlu0 %v496, 113
    %v521 = vpop.permute.xlu0 %520
    %522 = vrot.lane.b32.xlu0 %v495, 113
    %v523 = vpop.permute.xlu0 %522
    %524 = vrot.lane.b32.xlu0 %v499, 113
    %v525 = vpop.permute.xlu0 %524
    %526 = vrot.lane.b32.xlu0 %v498, 113
    %v527 = vpop.permute.xlu0 %526
    %528 = vrot.lane.b32.xlu0 %v502, 113
    %v529 = vpop.permute.xlu0 %528
    %530 = vrot.lane.b32.xlu0 %v501, 113
    %v531 = vpop.permute.xlu0 %530
    %532 = vrot.lane.b32.xlu0 %v505, 113
    %v533 = vpop.permute.xlu0 %532
    %534 = vrot.lane.b32.xlu0 %v504, 113
    %v535 = vpop.permute.xlu0 %534
    %536 = vrot.lane.b32.xlu0 %v508, 113
    %v537 = vpop.permute.xlu0 %536
    %538 = vrot.lane.b32.xlu0 %v507, 113
    %v539 = vpop.permute.xlu0 %538
    %540 = vrot.lane.b32.xlu0 %v511, 113
    %v541 = vpop.permute.xlu0 %540
    %542 = vrot.lane.b32.xlu0 %v510, 113
    %v543 = vpop.permute.xlu0 %542
    %v560 = vadd.f32 %v471, %v513
    %v561 = vadd.f32 %v472, %v515
    %v562 = vadd.f32 %v473, %v517
    %v563 = vadd.f32 %v474, %v519
    %v564 = vadd.f32 %v475, %v521
    %v565 = vadd.f32 %v476, %v523
    %v566 = vadd.f32 %v477, %v525
    %v567 = vadd.f32 %v478, %v527
    %v568 = vadd.f32 %v479, %v529
    %v569 = vadd.f32 %v480, %v531
    %v570 = vadd.f32 %v481, %v533
    %v571 = vadd.f32 %v482, %v535
    %v572 = vadd.f32 %v483, %v537
    %v573 = vadd.f32 %v484, %v539
    %v574 = vadd.f32 %v485, %v541
    %v575 = vadd.f32 %v486, %v543
    %vm576 = vcmask 1043456
    %v577 = vrot.slane %v215, 4
    %v578 = vrot.slane %v220, 4
    %v579 = vsel %vm576, %v577, %v578
    %v580 = vrot.slane %v225, 4
    %v581 = vrot.slane %v230, 4
    %v582 = vsel %vm576, %v580, %v581
    %v583 = vrot.slane %v235, 4
    %v584 = vrot.slane %v240, 4
    %v585 = vsel %vm576, %v583, %v584
    %v586 = vrot.slane %v245, 4
    %v587 = vrot.slane %v250, 4
    %v588 = vsel %vm576, %v586, %v587
    %v589 = vrot.slane %v255, 4
    %v590 = vrot.slane %v260, 4
    %v591 = vsel %vm576, %v589, %v590
    %v592 = vrot.slane %v265, 4
    %v593 = vrot.slane %v270, 4
    %v594 = vsel %vm576, %v592, %v593
    %v595 = vrot.slane %v275, 4
    %v596 = vrot.slane %v280, 4
    %v597 = vsel %vm576, %v595, %v596
    %v598 = vrot.slane %v285, 4
    %v599 = vrot.slane %v290, 4
    %v600 = vsel %vm576, %v598, %v599
    %601 = vrot.lane.b32.xlu0 %v579, 108
    %v602 = vpop.permute.xlu0 %601
    %603 = vrot.lane.b32.xlu0 %v578, 108
    %v604 = vpop.permute.xlu0 %603
    %605 = vrot.lane.b32.xlu0 %v582, 108
    %v606 = vpop.permute.xlu0 %605
    %607 = vrot.lane.b32.xlu0 %v581, 108
    %v608 = vpop.permute.xlu0 %607
    %609 = vrot.lane.b32.xlu0 %v585, 108
    %v610 = vpop.permute.xlu0 %609
    %611 = vrot.lane.b32.xlu0 %v584, 108
    %v612 = vpop.permute.xlu0 %611
    %613 = vrot.lane.b32.xlu0 %v588, 108
    %v614 = vpop.permute.xlu0 %613
    %615 = vrot.lane.b32.xlu0 %v587, 108
    %v616 = vpop.permute.xlu0 %615
    %617 = vrot.lane.b32.xlu0 %v591, 108
    %v618 = vpop.permute.xlu0 %617
    %619 = vrot.lane.b32.xlu0 %v590, 108
    %v620 = vpop.permute.xlu0 %619
    %621 = vrot.lane.b32.xlu0 %v594, 108
    %v622 = vpop.permute.xlu0 %621
    %623 = vrot.lane.b32.xlu0 %v593, 108
    %v624 = vpop.permute.xlu0 %623
    %625 = vrot.lane.b32.xlu0 %v597, 108
    %v626 = vpop.permute.xlu0 %625
    %627 = vrot.lane.b32.xlu0 %v596, 108
    %v628 = vpop.permute.xlu0 %627
    %629 = vrot.lane.b32.xlu0 %v600, 108
    %v630 = vpop.permute.xlu0 %629
    %631 = vrot.lane.b32.xlu0 %v599, 108
    %v632 = vpop.permute.xlu0 %631
    %v649 = vadd.f32 %v560, %v602
    %v650 = vadd.f32 %v561, %v604
    %v651 = vadd.f32 %v562, %v606
    %v652 = vadd.f32 %v563, %v608
    %v653 = vadd.f32 %v564, %v610
    %v654 = vadd.f32 %v565, %v612
    %v655 = vadd.f32 %v566, %v614
    %v656 = vadd.f32 %v567, %v616
    %v657 = vadd.f32 %v568, %v618
    %v658 = vadd.f32 %v569, %v620
    %v659 = vadd.f32 %v570, %v622
    %v660 = vadd.f32 %v571, %v624
    %v661 = vadd.f32 %v572, %v626
    %v662 = vadd.f32 %v573, %v628
    %v663 = vadd.f32 %v574, %v630
    %v664 = vadd.f32 %v575, %v632
    %v665 = vld [vmem:[%s2] sm:$0x1]
    %v667 = vlaneseq
    %v668 = vshrl.u32 %v667, 7
    %v669 = vsub.s32 0, %v668
    %v670 = vrot.slane %v665, %v669
    %v672 = vadd.f32 %v649, %v670
    %v673 = vadd.f32 %v650, %v670
    %v674 = vadd.f32 %v651, %v670
    %v675 = vadd.f32 %v652, %v670
    %v676 = vadd.f32 %v653, %v670
    %v677 = vadd.f32 %v654, %v670
    %v678 = vadd.f32 %v655, %v670
    %v679 = vadd.f32 %v656, %v670
    %v680 = vadd.f32 %v657, %v670
    %v681 = vadd.f32 %v658, %v670
    %v682 = vadd.f32 %v659, %v670
    %v683 = vadd.f32 %v660, %v670
    %v684 = vadd.f32 %v661, %v670
    %v685 = vadd.f32 %v662, %v670
    %v686 = vadd.f32 %v663, %v670
    %v687 = vadd.f32 %v664, %v670
    %v688 = vlaneseq
    %v689 = vshrl.u32 %v688, 7
    %s690 = smul.u32 0, 8
    %v691 = vstv %s690
    %v692 = vadd.s32 %v689, %v691
    %vm693 = vcmp.lt.s32.totalorder %v692, 2
    %v694 = vsel %vm693, 1, 0
    %v695 = vcvt.s32.f32 %v694
    %vm696 = vcmask 39936
    %v697 = vsel %vm696, %v672, 0.0
    %vm698 = vcmask 35840
    %v699 = vsel %vm698, %v673, 0.0
    %v700 = vadd.f32 %v697, %v699
    %v701 = vrot.slane %v700, 4
    %v702 = vadd.f32 %v700, %v701
    %v703 = vrot.slane %v702, 2
    %v704 = vadd.f32 %v702, %v703
    %v705 = vrot.slane %v704, 1
    %v706 = vadd.f32 %v704, %v705
    %v707 = vsel %vm696, %v674, 0.0
    %v708 = vsel %vm698, %v675, 0.0
    %v709 = vadd.f32 %v707, %v708
    %v710 = vrot.slane %v709, 4
    %v711 = vadd.f32 %v709, %v710
    %v712 = vrot.slane %v711, 2
    %v713 = vadd.f32 %v711, %v712
    %v714 = vrot.slane %v713, 1
    %v715 = vadd.f32 %v713, %v714
    %v716 = vsel %vm696, %v676, 0.0
    %v717 = vsel %vm698, %v677, 0.0
    %v718 = vadd.f32 %v716, %v717
    %v719 = vrot.slane %v718, 4
    %v720 = vadd.f32 %v718, %v719
    %v721 = vrot.slane %v720, 2
    %v722 = vadd.f32 %v720, %v721
    %v723 = vrot.slane %v722, 1
    %v724 = vadd.f32 %v722, %v723
    %v725 = vsel %vm696, %v678, 0.0
    %v726 = vsel %vm698, %v679, 0.0
    %v727 = vadd.f32 %v725, %v726
    %v728 = vrot.slane %v727, 4
    %v729 = vadd.f32 %v727, %v728
    %v730 = vrot.slane %v729, 2
    %v731 = vadd.f32 %v729, %v730
    %v732 = vrot.slane %v731, 1
    %v733 = vadd.f32 %v731, %v732
    %v734 = vsel %vm696, %v680, 0.0
    %v735 = vsel %vm698, %v681, 0.0
    %v736 = vadd.f32 %v734, %v735
    %v737 = vrot.slane %v736, 4
    %v738 = vadd.f32 %v736, %v737
    %v739 = vrot.slane %v738, 2
    %v740 = vadd.f32 %v738, %v739
    %v741 = vrot.slane %v740, 1
    %v742 = vadd.f32 %v740, %v741
    %v743 = vsel %vm696, %v682, 0.0
    %v744 = vsel %vm698, %v683, 0.0
    %v745 = vadd.f32 %v743, %v744
    %v746 = vrot.slane %v745, 4
    %v747 = vadd.f32 %v745, %v746
    %v748 = vrot.slane %v747, 2
    %v749 = vadd.f32 %v747, %v748
    %v750 = vrot.slane %v749, 1
    %v751 = vadd.f32 %v749, %v750
    %v752 = vsel %vm696, %v684, 0.0
    %v753 = vsel %vm698, %v685, 0.0
    %v754 = vadd.f32 %v752, %v753
    %v755 = vrot.slane %v754, 4
    %v756 = vadd.f32 %v754, %v755
    %v757 = vrot.slane %v756, 2
    %v758 = vadd.f32 %v756, %v757
    %v759 = vrot.slane %v758, 1
    %v760 = vadd.f32 %v758, %v759
    %v761 = vsel %vm696, %v686, 0.0
    %v762 = vsel %vm698, %v687, 0.0
    %v763 = vadd.f32 %v761, %v762
    %v764 = vrot.slane %v763, 4
    %v765 = vadd.f32 %v763, %v764
    %v766 = vrot.slane %v765, 2
    %v767 = vadd.f32 %v765, %v766
    %v768 = vrot.slane %v767, 1
    %v769 = vadd.f32 %v767, %v768
    %v771 = vrot.slane %v695, 1
    %v772 = vrot.slane %v695, 2
    %v773 = vrot.slane %v695, 3
    %v774 = vrot.slane %v695, 4
    %v775 = vrot.slane %v695, 5
    %v776 = vrot.slane %v695, 6
    %v777 = vrot.slane %v695, 7
    %v786 = vmul.f32 %v706, %v695
    %v787 = vmul.f32 %v715, %v771
    %v788 = vmul.f32 %v724, %v772
    %v789 = vmul.f32 %v733, %v773
    %v790 = vmul.f32 %v742, %v774
    %v791 = vmul.f32 %v751, %v775
    %v792 = vmul.f32 %v760, %v776
    %v793 = vmul.f32 %v769, %v777
    %v794 = vmul.f32 %v672, %v672
    %v795 = vmul.f32 %v673, %v673
    %v796 = vmul.f32 %v674, %v674
    %v797 = vmul.f32 %v675, %v675
    %v798 = vmul.f32 %v676, %v676
    %v799 = vmul.f32 %v677, %v677
    %v800 = vmul.f32 %v678, %v678
    %v801 = vmul.f32 %v679, %v679
    %v802 = vmul.f32 %v680, %v680
    %v803 = vmul.f32 %v681, %v681
    %v804 = vmul.f32 %v682, %v682
    %v805 = vmul.f32 %v683, %v683
    %v806 = vmul.f32 %v684, %v684
    %v807 = vmul.f32 %v685, %v685
    %v808 = vmul.f32 %v686, %v686
    %v809 = vmul.f32 %v687, %v687
    %v810 = vsel %vm696, %v794, 0.0
    %v811 = vsel %vm698, %v795, 0.0
    %v812 = vadd.f32 %v810, %v811
    %v813 = vrot.slane %v812, 4
    %v814 = vadd.f32 %v812, %v813
    %v815 = vrot.slane %v814, 2
    %v816 = vadd.f32 %v814, %v815
    %v817 = vrot.slane %v816, 1
    %v818 = vadd.f32 %v816, %v817
    %v819 = vsel %vm696, %v796, 0.0
    %v820 = vsel %vm698, %v797, 0.0
    %v821 = vadd.f32 %v819, %v820
    %v822 = vrot.slane %v821, 4
    %v823 = vadd.f32 %v821, %v822
    %v824 = vrot.slane %v823, 2
    %v825 = vadd.f32 %v823, %v824
    %v826 = vrot.slane %v825, 1
    %v827 = vadd.f32 %v825, %v826
    %v828 = vsel %vm696, %v798, 0.0
    %v829 = vsel %vm698, %v799, 0.0
    %v830 = vadd.f32 %v828, %v829
    %v831 = vrot.slane %v830, 4
    %v832 = vadd.f32 %v830, %v831
    %v833 = vrot.slane %v832, 2
    %v834 = vadd.f32 %v832, %v833
    %v835 = vrot.slane %v834, 1
    %v836 = vadd.f32 %v834, %v835
    %v837 = vsel %vm696, %v800, 0.0
    %v838 = vsel %vm698, %v801, 0.0
    %v839 = vadd.f32 %v837, %v838
    %v840 = vrot.slane %v839, 4
    %v841 = vadd.f32 %v839, %v840
    %v842 = vrot.slane %v841, 2
    %v843 = vadd.f32 %v841, %v842
    %v844 = vrot.slane %v843, 1
    %v845 = vadd.f32 %v843, %v844
    %v846 = vsel %vm696, %v802, 0.0
    %v847 = vsel %vm698, %v803, 0.0
    %v848 = vadd.f32 %v846, %v847
    %v849 = vrot.slane %v848, 4
    %v850 = vadd.f32 %v848, %v849
    %v851 = vrot.slane %v850, 2
    %v852 = vadd.f32 %v850, %v851
    %v853 = vrot.slane %v852, 1
    %v854 = vadd.f32 %v852, %v853
    %v855 = vsel %vm696, %v804, 0.0
    %v856 = vsel %vm698, %v805, 0.0
    %v857 = vadd.f32 %v855, %v856
    %v858 = vrot.slane %v857, 4
    %v859 = vadd.f32 %v857, %v858
    %v860 = vrot.slane %v859, 2
    %v861 = vadd.f32 %v859, %v860
    %v862 = vrot.slane %v861, 1
    %v863 = vadd.f32 %v861, %v862
    %v864 = vsel %vm696, %v806, 0.0
    %v865 = vsel %vm698, %v807, 0.0
    %v866 = vadd.f32 %v864, %v865
    %v867 = vrot.slane %v866, 4
    %v868 = vadd.f32 %v866, %v867
    %v869 = vrot.slane %v868, 2
    %v870 = vadd.f32 %v868, %v869
    %v871 = vrot.slane %v870, 1
    %v872 = vadd.f32 %v870, %v871
    %v873 = vsel %vm696, %v808, 0.0
    %v874 = vsel %vm698, %v809, 0.0
    %v875 = vadd.f32 %v873, %v874
    %v876 = vrot.slane %v875, 4
    %v877 = vadd.f32 %v875, %v876
    %v878 = vrot.slane %v877, 2
    %v879 = vadd.f32 %v877, %v878
    %v880 = vrot.slane %v879, 1
    %v881 = vadd.f32 %v879, %v880
    %v882 = vmul.f32 %v818, %v695
    %v883 = vmul.f32 %v827, %v771
    %v884 = vmul.f32 %v836, %v772
    %v885 = vmul.f32 %v845, %v773
    %v886 = vmul.f32 %v854, %v774
    %v887 = vmul.f32 %v863, %v775
    %v888 = vmul.f32 %v872, %v776
    %v889 = vmul.f32 %v881, %v777
    %v890 = vld [vmem:[#allocation2] sm:$0x1]
    %v899 = vrot.slane %v787, 7
    %vm900 = vcmask 1041409
    %v901 = vsel %vm900, %v899, %v786
    %v902 = vrot.slane %v788, 6
    %vm903 = vcmask 1042434
    %v904 = vsel %vm903, %v902, %v901
    %v905 = vrot.slane %v789, 5
    %vm906 = vcmask 1043459
    %v907 = vsel %vm906, %v905, %v904
    %v908 = vrot.slane %v790, 4
    %vm909 = vcmask 1044484
    %v910 = vsel %vm909, %v908, %v907
    %v911 = vrot.slane %v791, 3
    %vm912 = vcmask 1045509
    %v913 = vsel %vm912, %v911, %v910
    %v914 = vrot.slane %v792, 2
    %vm915 = vcmask 1046534
    %v916 = vsel %vm915, %v914, %v913
    %v917 = vrot.slane %v793, 1
    %vm918 = vcmask 1047559
    %v919 = vsel %vm918, %v917, %v916
    %v921 = vsel %vm696, %v919, 0.0
    %v922 = vrot.slane %v921, 4
    %v923 = vadd.f32 %v921, %v922
    %v924 = vrot.slane %v923, 2
    %v925 = vadd.f32 %v923, %v924
    %v926 = vrot.slane %v925, 1
    %v927 = vadd.f32 %v925, %v926
    %v928 = vadd.f32 %v890, %v927
    %vm929 = vcmask 32768
    %930 = vst.msk [vmem:[#allocation2] sm:$0x1] %vm929, %v928
    %v931 = vld [vmem:[#allocation3] sm:$0x1]
    %v940 = vrot.slane %v883, 7
    %v941 = vsel %vm900, %v940, %v882
    %v942 = vrot.slane %v884, 6
    %v943 = vsel %vm903, %v942, %v941
    %v944 = vrot.slane %v885, 5
    %v945 = vsel %vm906, %v944, %v943
    %v946 = vrot.slane %v886, 4
    %v947 = vsel %vm909, %v946, %v945
    %v948 = vrot.slane %v887, 3
    %v949 = vsel %vm912, %v948, %v947
    %v950 = vrot.slane %v888, 2
    %v951 = vsel %vm915, %v950, %v949
    %v952 = vrot.slane %v889, 1
    %v953 = vsel %vm918, %v952, %v951
    %v955 = vsel %vm696, %v953, 0.0
    %v956 = vrot.slane %v955, 4
    %v957 = vadd.f32 %v955, %v956
    %v958 = vrot.slane %v957, 2
    %v959 = vadd.f32 %v957, %v958
    %v960 = vrot.slane %v959, 1
    %v961 = vadd.f32 %v959, %v960
    %v962 = vadd.f32 %v931, %v961
    %963 = vst.msk [vmem:[#allocation3] sm:$0x1] %vm929, %v962
    %v964 = vsel %vm696, %v672, -inf
    %v965 = vsel %vm698, %v673, -inf
    %v966 = vmax.f32 %v964, %v965
    %v967 = vrot.slane %v966, 4
    %v968 = vmax.f32 %v966, %v967
    %v969 = vrot.slane %v968, 2
    %v970 = vmax.f32 %v968, %v969
    %v971 = vrot.slane %v970, 1
    %v972 = vmax.f32 %v970, %v971
    %v973 = vsel %vm696, %v674, -inf
    %v974 = vsel %vm698, %v675, -inf
    %v975 = vmax.f32 %v973, %v974
    %v976 = vrot.slane %v975, 4
    %v977 = vmax.f32 %v975, %v976
    %v978 = vrot.slane %v977, 2
    %v979 = vmax.f32 %v977, %v978
    %v980 = vrot.slane %v979, 1
    %v981 = vmax.f32 %v979, %v980
    %v982 = vsel %vm696, %v676, -inf
    %v983 = vsel %vm698, %v677, -inf
    %v984 = vmax.f32 %v982, %v983
    %v985 = vrot.slane %v984, 4
    %v986 = vmax.f32 %v984, %v985
    %v987 = vrot.slane %v986, 2
    %v988 = vmax.f32 %v986, %v987
    %v989 = vrot.slane %v988, 1
    %v990 = vmax.f32 %v988, %v989
    %v991 = vsel %vm696, %v678, -inf
    %v992 = vsel %vm698, %v679, -inf
    %v993 = vmax.f32 %v991, %v992
    %v994 = vrot.slane %v993, 4
    %v995 = vmax.f32 %v993, %v994
    %v996 = vrot.slane %v995, 2
    %v997 = vmax.f32 %v995, %v996
    %v998 = vrot.slane %v997, 1
    %v999 = vmax.f32 %v997, %v998
    %v1000 = vsel %vm696, %v680, -inf
    %v1001 = vsel %vm698, %v681, -inf
    %v1002 = vmax.f32 %v1000, %v1001
    %v1003 = vrot.slane %v1002, 4
    %v1004 = vmax.f32 %v1002, %v1003
    %v1005 = vrot.slane %v1004, 2
    %v1006 = vmax.f32 %v1004, %v1005
    %v1007 = vrot.slane %v1006, 1
    %v1008 = vmax.f32 %v1006, %v1007
    %v1009 = vsel %vm696, %v682, -inf
    %v1010 = vsel %vm698, %v683, -inf
    %v1011 = vmax.f32 %v1009, %v1010
    %v1012 = vrot.slane %v1011, 4
    %v1013 = vmax.f32 %v1011, %v1012
    %v1014 = vrot.slane %v1013, 2
    %v1015 = vmax.f32 %v1013, %v1014
    %v1016 = vrot.slane %v1015, 1
    %v1017 = vmax.f32 %v1015, %v1016
    %v1018 = vsel %vm696, %v684, -inf
    %v1019 = vsel %vm698, %v685, -inf
    %v1020 = vmax.f32 %v1018, %v1019
    %v1021 = vrot.slane %v1020, 4
    %v1022 = vmax.f32 %v1020, %v1021
    %v1023 = vrot.slane %v1022, 2
    %v1024 = vmax.f32 %v1022, %v1023
    %v1025 = vrot.slane %v1024, 1
    %v1026 = vmax.f32 %v1024, %v1025
    %v1027 = vsel %vm696, %v686, -inf
    %v1028 = vsel %vm698, %v687, -inf
    %v1029 = vmax.f32 %v1027, %v1028
    %v1030 = vrot.slane %v1029, 4
    %v1031 = vmax.f32 %v1029, %v1030
    %v1032 = vrot.slane %v1031, 2
    %v1033 = vmax.f32 %v1031, %v1032
    %v1034 = vrot.slane %v1033, 1
    %v1035 = vmax.f32 %v1033, %v1034
    %v1044 = vsel %vm900, %v981, %v972
    %v1045 = vsel %vm903, %v990, %v1044
    %v1046 = vsel %vm906, %v999, %v1045
    %v1047 = vsel %vm909, %v1008, %v1046
    %v1048 = vsel %vm912, %v1017, %v1047
    %v1049 = vsel %vm915, %v1026, %v1048
    %v1050 = vsel %vm918, %v1035, %v1049
    %s1052 = scalar_lea.vmem [#allocation4], %s690
    %1053 = vst.msk [vmem:[%s1052] sm:$0xff] %vm696, %v1050
    %v1054 = vsel %vm696, %v672, inf
    %v1055 = vsel %vm698, %v673, inf
    %v1056 = vmin.f32 %v1054, %v1055
    %v1057 = vrot.slane %v1056, 4
    %v1058 = vmin.f32 %v1056, %v1057
    %v1059 = vrot.slane %v1058, 2
    %v1060 = vmin.f32 %v1058, %v1059
    %v1061 = vrot.slane %v1060, 1
    %v1062 = vmin.f32 %v1060, %v1061
    %v1063 = vsel %vm696, %v674, inf
    %v1064 = vsel %vm698, %v675, inf
    %v1065 = vmin.f32 %v1063, %v1064
    %v1066 = vrot.slane %v1065, 4
    %v1067 = vmin.f32 %v1065, %v1066
    %v1068 = vrot.slane %v1067, 2
    %v1069 = vmin.f32 %v1067, %v1068
    %v1070 = vrot.slane %v1069, 1
    %v1071 = vmin.f32 %v1069, %v1070
    %v1072 = vsel %vm696, %v676, inf
    %v1073 = vsel %vm698, %v677, inf
    %v1074 = vmin.f32 %v1072, %v1073
    %v1075 = vrot.slane %v1074, 4
    %v1076 = vmin.f32 %v1074, %v1075
    %v1077 = vrot.slane %v1076, 2
    %v1078 = vmin.f32 %v1076, %v1077
    %v1079 = vrot.slane %v1078, 1
    %v1080 = vmin.f32 %v1078, %v1079
    %v1081 = vsel %vm696, %v678, inf
    %v1082 = vsel %vm698, %v679, inf
    %v1083 = vmin.f32 %v1081, %v1082
    %v1084 = vrot.slane %v1083, 4
    %v1085 = vmin.f32 %v1083, %v1084
    %v1086 = vrot.slane %v1085, 2
    %v1087 = vmin.f32 %v1085, %v1086
    %v1088 = vrot.slane %v1087, 1
    %v1089 = vmin.f32 %v1087, %v1088
    %v1090 = vsel %vm696, %v680, inf
    %v1091 = vsel %vm698, %v681, inf
    %v1092 = vmin.f32 %v1090, %v1091
    %v1093 = vrot.slane %v1092, 4
    %v1094 = vmin.f32 %v1092, %v1093
    %v1095 = vrot.slane %v1094, 2
    %v1096 = vmin.f32 %v1094, %v1095
    %v1097 = vrot.slane %v1096, 1
    %v1098 = vmin.f32 %v1096, %v1097
    %v1099 = vsel %vm696, %v682, inf
    %v1100 = vsel %vm698, %v683, inf
    %v1101 = vmin.f32 %v1099, %v1100
    %v1102 = vrot.slane %v1101, 4
    %v1103 = vmin.f32 %v1101, %v1102
    %v1104 = vrot.slane %v1103, 2
    %v1105 = vmin.f32 %v1103, %v1104
    %v1106 = vrot.slane %v1105, 1
    %v1107 = vmin.f32 %v1105, %v1106
    %v1108 = vsel %vm696, %v684, inf
    %v1109 = vsel %vm698, %v685, inf
    %v1110 = vmin.f32 %v1108, %v1109
    %v1111 = vrot.slane %v1110, 4
    %v1112 = vmin.f32 %v1110, %v1111
    %v1113 = vrot.slane %v1112, 2
    %v1114 = vmin.f32 %v1112, %v1113
    %v1115 = vrot.slane %v1114, 1
    %v1116 = vmin.f32 %v1114, %v1115
    %v1117 = vsel %vm696, %v686, inf
    %v1118 = vsel %vm698, %v687, inf
    %v1119 = vmin.f32 %v1117, %v1118
    %v1120 = vrot.slane %v1119, 4
    %v1121 = vmin.f32 %v1119, %v1120
    %v1122 = vrot.slane %v1121, 2
    %v1123 = vmin.f32 %v1121, %v1122
    %v1124 = vrot.slane %v1123, 1
    %v1125 = vmin.f32 %v1123, %v1124
    %v1134 = vsel %vm900, %v1071, %v1062
    %v1135 = vsel %vm903, %v1080, %v1134
    %v1136 = vsel %vm906, %v1089, %v1135
    %v1137 = vsel %vm909, %v1098, %v1136
    %v1138 = vsel %vm912, %v1107, %v1137
    %v1139 = vsel %vm915, %v1116, %v1138
    %v1140 = vsel %vm918, %v1125, %v1139
    %s1142 = scalar_lea.vmem [#allocation5], %s690
    %1143 = vst.msk [vmem:[%s1142] sm:$0xff] %vm696, %v1140
    // Predicated region
    $region38: #{tpu_custom_call.1} parent=1 // pred_check
      %p1144 = pneg %p40
    $region39: #{tpu_custom_call.1} parent=1 // pred_check_branch
      %1146 = sbr.rel (%p1144) target = $region41
    $region40: #{tpu_custom_call.1} parent=1 // pred_region
      %v1147 = vld [vmem:[#allocation2] sm:$0x1]
      %v1148 = vmul.f32 %v1147, 0.041666668
      %v1149 = vld [vmem:[#allocation3] sm:$0x1]
      %v1150 = vmul.f32 %v1149, 0.041666668
      %v1151 = vmul.f32 %v1148, %v1148
      %v1152 = vsub.f32 %v1150, %v1151
      %v1153 = vmax.f32 %v1152, 0.0
      %v1154 = vld [vmem:[%s3] sm:$0x1]
      %v1155 = vadd.f32 %v1153, 1e-05
      %v1156 = vrsqrt.pop %v1155
      %v1157 = vmul.f32 %v1154, %v1156
      %v1158 = vld [vmem:[%s4] sm:$0x1]
      %v1159 = vmul.f32 %v1148, %v1157
      %v1160 = vsub.f32 %v1158, %v1159
      %vm1161 = vcmp.ge.f32.partialorder %v1157, 0.0
      %v1162 = vld [vmem:[#allocation4] sm:$0xff]
      %v1163 = vld [vmem:[#allocation5] sm:$0xff]
      %v1164 = vsel %vm1161, 1, 0
      %v1165 = vlaneseq
      %v1166 = vshrl.u32 %v1165, 7
      %v1167 = vsub.s32 0, %v1166
      %v1168 = vrot.slane %v1164, %v1167
      %vm1169 = vcmp.eq.s32.totalorder %v1168, 1
      %v1170 = vsel %vm1169, %v1162, %v1163
      %v1172 = vlaneseq
      %v1173 = vshrl.u32 %v1172, 7
      %v1174 = vsub.s32 0, %v1173
      %v1175 = vrot.slane %v1157, %v1174
      %v1177 = vmul.f32 %v1170, %v1175
      %v1179 = vlaneseq
      %v1180 = vshrl.u32 %v1179, 7
      %v1181 = vsub.s32 0, %v1180
      %v1182 = vrot.slane %v1160, %v1181
      %v1184 = vadd.f32 %v1177, %v1182
      %vm1185 = vcmp.ge.f32.partialorder %v1184, 0.0
      %v1186 = vmul.f32 %v1184, 0.3
      %v1187 = vsel %vm1185, %v1184, %v1186
      %v1188 = vld [vmem:[%s5] sm:$0x1f]
      %v1189 = vld [vmem:[%s6] sm:$0x1]
      %v1191 = vlaneseq
      %v1192 = vshrl.u32 %v1191, 7
      %v1193 = vsub.s32 0, %v1192
      %v1194 = vrot.slane %v1189, %v1193
      %v1197 = vsel %vm696, %v1187, 0
      %v1200 = vsel %vm487, %v1188, 0
      %1202 = vmatprep.subr.mxu0 0.0
      %1203 = vmatpush1.msra.mxu0 %v1200
      %1204 = vmatprep.subr.mxu0 0.0
      %1205 = vmatpush1.msra.mxu0 0.0
      %1206 = vmatprep.subr.mxu0 0.0
      %1207 = vmatpush1.msra.mxu0 0.0
      %1208 = vmatprep.subr.mxu0 0.0
      %1209 = vmatpush1.msra.mxu0 0.0
      %1210 = vmatprep.subr.mxu0 0.0
      %1211 = vmatpush1.msra.mxu0 0.0
      %1212 = vmatprep.subr.mxu0 0.0
      %1213 = vmatpush1.msra.mxu0 0.0
      %1214 = vmatprep.subr.mxu0 0.0
      %1215 = vmatpush1.msra.mxu0 0.0
      %1216 = vmatprep.subr.mxu0 0.0
      %1217 = vmatpush1.msra.mxu0 0.0
      %1218 = vmatprep.subr.mxu0 0.0
      %1219 = vmatpush1.msra.mxu0 0.0
      %1220 = vmatprep.subr.mxu0 0.0
      %1221 = vmatpush1.msra.mxu0 0.0
      %1222 = vmatprep.subr.mxu0 0.0
      %1223 = vmatpush1.msra.mxu0 0.0
      %1224 = vmatprep.subr.mxu0 0.0
      %1225 = vmatpush1.msra.mxu0 0.0
      %1226 = vmatprep.subr.mxu0 0.0
      %1227 = vmatpush1.msra.mxu0 0.0
      %1228 = vmatprep.subr.mxu0 0.0
      %1229 = vmatpush1.msra.mxu0 0.0
      %1230 = vmatprep.subr.mxu0 0.0
      %1231 = vmatpush1.msra.mxu0 0.0
      %1232 = vmatprep.subr.mxu0 0.0
      %1233 = vmatpush1.msra.mxu0 0.0
      %1234 = vmatprep.subr.mxu0 0.0
      %1235 = vmatpush1.msra.mxu0 0.0
      %1236 = vmatprep.subr.mxu0 0.0
      %1237 = vmatpush1.msra.mxu0 0.0
      %1238 = vmatprep.subr.mxu0 0.0
      %1239 = vmatpush1.msra.mxu0 0.0
      %1240 = vmatprep.subr.mxu0 0.0
      %1241 = vmatpush1.msra.mxu0 0.0
      %1242 = vmatprep.subr.mxu0 0.0
      %1243 = vmatpush1.msra.mxu0 0.0
      %1244 = vmatprep.subr.mxu0 0.0
      %1245 = vmatpush1.msra.mxu0 0.0
      %1246 = vmatprep.subr.mxu0 0.0
      %1247 = vmatpush1.msra.mxu0 0.0
      %1248 = vmatprep.subr.mxu0 0.0
      %1249 = vmatpush1.msra.mxu0 0.0
      %1250 = vmatprep.subr.mxu0 0.0
      %1251 = vmatpush1.msra.mxu0 0.0
      %1252 = vmatprep.subr.mxu0 0.0
      %1253 = vmatpush1.msra.mxu0 0.0
      %1254 = vmatprep.subr.mxu0 0.0
      %1255 = vmatpush1.msra.mxu0 0.0
      %1256 = vmatprep.subr.mxu0 0.0
      %1257 = vmatpush1.msra.mxu0 0.0
      %1258 = vmatprep.subr.mxu0 0.0
      %1259 = vmatpush1.msra.mxu0 0.0
      %1260 = vmatprep.subr.mxu0 0.0
      %1261 = vmatpush1.msra.mxu0 0.0
      %1262 = vmatprep.subr.mxu0 0.0
      %1263 = vmatpush1.msra.mxu0 0.0
      %1264 = vmatprep.subr.mxu0 0.0
      %1265 = vmatpush1.msra.mxu0 0.0
      %1266 = vmatprep.mubr.f32.mxu0 0.0
      %1267 = vmatmul.mubr.f32.gmra.mrb[0].mxu0 %v1197
      %v1268 = vpop.f32.mrb[0].mxu0
      %v1269 = vadd.f32 %v1194, %v1268
      %v1270 = vpop.f32.mrb[0].mxu0
      %1271 = vdwg.mxu0
      %vm1272 = vcmask 15360
      %1273 = vst.msk [vmem:[%s7] sm:$0xff] %vm1272, %v1269
    $region41: #{tpu_custom_call.1} parent=1 // pred_fallthru
      _
    // Predicated region
    $region42: #{tpu_custom_call.1} parent=1 // pred_check
      _
    $region43: #{tpu_custom_call.1} parent=1 // pred_check_branch
      %1275 = sbr.rel (0) target = $region45
    $region44: #{tpu_custom_call.1} parent=1 // pred_region
      _
    $region45: #{tpu_custom_call.1} parent=1 // pred_fallthru
      _
    // Predicated region
    $region46: #{tpu_custom_call.1} parent=1 // pred_check
      _
    $region47: #{tpu_custom_call.1} parent=1 // pred_check_branch
      %1277 = sbr.rel (0) target = $region49
    $region48: #{tpu_custom_call.1} parent=1 // pred_region
      _
    $region49: #{tpu_custom_call.1} parent=1 // pred_fallthru
      _
    %1278 = vsyncpa [#allocation7], 1

</llo_original>
